<compile_context>
chip_gen: v5e
topology: v5e:2x2
jax: 0.10.0
libtpu: 0.0.40
codegen_flags: <defaults>
</compile_context>

<pallas_src>
import jax
import jax.numpy as jnp
from jax.experimental import pallas as pl
from jax.experimental.pallas import tpu as pltpu


def _rope_kernel_full(pos_ref, inv_ref, cos_ref, sin_ref):
    # pos_ref: (TM, 1) positions (native int/float dtype), rows on sublanes
    # inv_ref: (1, dim) float32, inv_freq already duplicated into both halves
    # cos_ref/sin_ref: (TM, dim) in the output dtype (= x.dtype)
    # Note: f32 positions are exact up to 2^24 -- far beyond realistic context.
    pos = pos_ref[...].astype(jnp.float32)          # (TM, 1)
    emb = pos * inv_ref[...]                        # (TM, dim), lane-dense
    cos_ref[...] = jnp.cos(emb).astype(cos_ref.dtype)
    sin_ref[...] = jnp.sin(emb).astype(sin_ref.dtype)


def _rope_kernel_half(pos_ref, inv_ref, cos_ref, sin_ref):
    # Only used when half % 128 == 0: half-width EUP work, vreg-aligned concat.
    pos = pos_ref[...].astype(jnp.float32)          # (TM, 1)
    freqs = pos * inv_ref[...]                      # (TM, half)
    c = jnp.cos(freqs)
    s = jnp.sin(freqs)
    cos_ref[...] = jnp.concatenate([c, c], axis=-1).astype(cos_ref.dtype)
    sin_ref[...] = jnp.concatenate([s, s], axis=-1).astype(sin_ref.dtype)


def _choose_row_tile(n_rows, dim, out_itemsize, vmem_budget_bytes=16 << 20):
    """Largest row tile whose double-buffered working set fits the VMEM budget.

    Working set per row:
      cos + sin output blocks, double-buffered: 2 * 2 * dim * out_itemsize
      positions block (1 lane wide -> padded to 128 lanes), double-buffered.
    """
    per_row = 2 * 2 * dim * out_itemsize + 2 * 128 * 4
    cand = 8
    for tm in (16384, 8192, 4096, 2048, 1024, 512, 256, 128, 64, 32, 16, 8):
        if tm * per_row <= vmem_budget_bytes:
            cand = tm
            break
    if n_rows <= cand:
        return n_rows            # single block covering the whole array
    return cand                  # ragged last tile handled by Pallas masking


def mistral_rotary_embedding(x, position_ids, inv_freq):
    """Returns (cos, sin), each of shape (B, S, dim) in x.dtype."""
    B, S = position_ids.shape
    half = inv_freq.shape[0]
    dim = 2 * half
    N = B * S
    out_dtype = x.dtype

    # Flatten (B, S) -> rows; rows on the sublane axis, dim on lanes.
    pos_2d = position_ids.reshape(N, 1)                       # native dtype

    use_half = (half % 128 == 0)
    if use_half:
        kernel = _rope_kernel_half
        inv_row = inv_freq.astype(jnp.float32).reshape(1, half)
        inv_width = half
    else:
        kernel = _rope_kernel_full
        inv_f = inv_freq.astype(jnp.float32)
        inv_row = jnp.concatenate([inv_f, inv_f]).reshape(1, dim)
        inv_width = dim

    TM = _choose_row_tile(N, dim, jnp.dtype(out_dtype).itemsize)
    grid = (pl.cdiv(N, TM),)

    out_sds = jax.ShapeDtypeStruct((N, dim), out_dtype)

    cos, sin = pl.pallas_call(
        kernel,
        out_shape=(out_sds, out_sds),
        grid_spec=pltpu.PrefetchScalarGridSpec(
            num_scalar_prefetch=0,
            grid=grid,
            in_specs=[
                pl.BlockSpec((TM, 1), lambda r: (r, 0)),           # positions
                pl.BlockSpec((1, inv_width), lambda r: (0, 0)),    # inv_freq
            ],
            out_specs=[
                pl.BlockSpec((TM, dim), lambda r: (r, 0)),
                pl.BlockSpec((TM, dim), lambda r: (r, 0)),
            ],
        ),
        compiler_params=pltpu.CompilerParams(
            dimension_semantics=("parallel",),
            vmem_limit_bytes=32 * 1024 * 1024,
        ),
    )(pos_2d, inv_row)

    return cos.reshape(B, S, dim), sin.reshape(B, S, dim)


def make_inv_freq(dim, base=10000.0):
    # inv_freq = 1 / base ** (arange(0, dim, 2) / dim)  -- deterministic param
    exponents = jnp.arange(0, dim, 2, dtype=jnp.float32) / float(dim)
    return 1.0 / (base ** exponents)


if __name__ == "__main__":
    key = jax.random.PRNGKey(0)

    B, S, dim = 2, 8, 32
    base = 10000.0

    # x is only used for its dtype in the PyTorch module.
    x = jax.random.normal(key, (B, S, dim), dtype=jnp.float32)
    position_ids = jnp.broadcast_to(
        jnp.arange(S, dtype=jnp.int32)[None, :], (B, S)
    )

    inv_freq = make_inv_freq(dim, base)

    cos, sin = mistral_rotary_embedding(x, position_ids, inv_freq)
    jax.block_until_ready((cos, sin))

    # Pure-JAX reference of the PyTorch math.
    freqs_ref = (
        position_ids.astype(jnp.float32)[:, :, None] * inv_freq[None, None, :]
    )
    emb_ref = jnp.concatenate([freqs_ref, freqs_ref], axis=-1)
    cos_ref = jnp.cos(emb_ref).astype(x.dtype)
    sin_ref = jnp.sin(emb_ref).astype(x.dtype)
    assert cos.shape == (B, S, dim) and sin.shape == (B, S, dim)
    assert cos.dtype == x.dtype and sin.dtype == x.dtype
    assert jnp.allclose(cos, cos_ref, atol=1e-5, rtol=1e-5)
    assert jnp.allclose(sin, sin_ref, atol=1e-5, rtol=1e-5)

    print("KERNEL_OK")
</pallas_src>

<mosaic_0001>
module attributes {stable_mosaic.version = 11 : i64} {
  func.func @_rope_kernel_full(%arg0: i32, %arg1: memref<16x1xi32, #tpu.memory_space<vmem>>, %arg2: memref<1x32xf32, #tpu.memory_space<vmem>>, %arg3: memref<16x32xf32, #tpu.memory_space<vmem>>, %arg4: memref<16x32xf32, #tpu.memory_space<vmem>>) attributes {dimension_semantics = [#tpu.dimension_semantics<parallel>], iteration_bounds = array<i64: 1>, scalar_prefetch = 0 : i64, scratch_operands = 0 : i64, tpu.core_type = #tpu.core_type<tc>, window_params = [{transform_indices = @transform_0, window_bounds = array<i64: 16, 1>}, {pipeline_mode = #tpu.pipeline_mode<synchronous>, transform_indices = @transform_1, window_bounds = array<i64: 1, 32>}, {transform_indices = @transform_2, window_bounds = array<i64: 16, 32>}, {transform_indices = @transform_3, window_bounds = array<i64: 16, 32>}]} {
    %c0 = arith.constant 0 : index
    %c0_0 = arith.constant 0 : index
    %0 = vector.load %arg1[%c0, %c0_0] : memref<16x1xi32, #tpu.memory_space<vmem>>, vector<16x1xi32>
    %1 = arith.sitofp %0 : vector<16x1xi32> to vector<16x1xf32>
    %c0_1 = arith.constant 0 : index
    %c0_2 = arith.constant 0 : index
    %2 = vector.load %arg2[%c0_1, %c0_2] : memref<1x32xf32, #tpu.memory_space<vmem>>, vector<1x32xf32>
    %3 = vector.broadcast %1 : vector<16x1xf32> to vector<16x32xf32>
    %4 = vector.broadcast %2 : vector<1x32xf32> to vector<16x32xf32>
    %5 = arith.mulf %3, %4 : vector<16x32xf32>
    %6 = math.cos %5 : vector<16x32xf32>
    %c0_3 = arith.constant 0 : index
    %c0_4 = arith.constant 0 : index
    %7 = vector.load %arg3[%c0_3, %c0_4] : memref<16x32xf32, #tpu.memory_space<vmem>>, vector<16x32xf32>
    tpu.vector_store %arg3[%c0_3, %c0_4], %6 {strides = array<i32>} : memref<16x32xf32, #tpu.memory_space<vmem>>, vector<16x32xf32>,
    %8 = math.sin %5 : vector<16x32xf32>
    %c0_5 = arith.constant 0 : index
    %c0_6 = arith.constant 0 : index
    %9 = vector.load %arg4[%c0_5, %c0_6] : memref<16x32xf32, #tpu.memory_space<vmem>>, vector<16x32xf32>
    tpu.vector_store %arg4[%c0_5, %c0_6], %8 {strides = array<i32>} : memref<16x32xf32, #tpu.memory_space<vmem>>, vector<16x32xf32>,
    return
  }
  func.func @transform_0(%arg0: i32) -> (i32, i32) {
    %c0_i32 = arith.constant 0 : i32
    %c0_i32_0 = arith.constant 0 : i32
    return %arg0, %c0_i32 : i32, i32
  }
  func.func @transform_1(%arg0: i32) -> (i32, i32) {
    %c0_i32 = arith.constant 0 : i32
    %c0_i32_0 = arith.constant 0 : i32
    %c0_i32_1 = arith.constant 0 : i32
    return %c0_i32, %c0_i32_0 : i32, i32
  }
  func.func @transform_2(%arg0: i32) -> (i32, i32) {
    %c0_i32 = arith.constant 0 : i32
    %c0_i32_0 = arith.constant 0 : i32
    return %arg0, %c0_i32 : i32, i32
  }
  func.func @transform_3(%arg0: i32) -> (i32, i32) {
    %c0_i32 = arith.constant 0 : i32
    %c0_i32_0 = arith.constant 0 : i32
    return %arg0, %c0_i32 : i32, i32
  }
}

</mosaic_0001>

<llo_original>
// kernel: tpu_custom_call.1
$region0: #{tpu_custom_call.1}
  #allocation0 [shape = 'u32[]', space=smem, size = 0x4, offset = 0x4, fixed_abs, tag = 'smem constant byte address 0x4 - core index']
  #allocation1 [shape = 'u32[72,128]{1,0:T(1,128)}', space=vmem, size = 0x9000, scoped, tag = 'internal scratch']
  %s0 = inlined_call_operand.vmem [shape: s32[16,1], index: 0, kind: input, shape index: {}]
  %s1 = inlined_call_operand.vmem [shape: f32[1,32], index: 1, kind: input, shape index: {}]
  %s2 = inlined_call_operand.hbm [shape: f32[16,32], index: 2, kind: output, shape index: {0}]
  %s3 = inlined_call_operand.hbm [shape: f32[16,32], index: 3, kind: output, shape index: {1}]
  %4 = xla_tuple %s2, %s3
  %s5 = sld [smem:[#allocation0]]
  $region26: #{tpu_custom_call.1} parent=0
    _
  %s7 = ssub.s32 1, %s5
  %s8 = scalar_select 0, %s7, %s5
  $region1: #{tpu_custom_call.1} parent=0
    #allocation2 [shape = 'u8[8192]{0}', space=vmem, size = 0x2000, scoped, tag = 'output window, operand 0, single buffered']
    #allocation3 [shape = 's32[1]{0}', space=sflag, size = 0x4, scoped, tag = 'scoped memory for tpu_custom_call.1']
    #allocation4 [shape = 'u8[8192]{0}', space=vmem, size = 0x2000, scoped, tag = 'output window, operand 1, single buffered']
    #allocation5 [shape = 's32[1]{0}', space=sflag, size = 0x4, scoped, tag = 'scoped memory for tpu_custom_call.1']
    %9 = vsyncpa [#allocation3], 0
    %10 = vsyncpa [#allocation5], 0
    // Predicated region
    $region2: #{tpu_custom_call.1} parent=1 // pred_check
      _
    $region3: #{tpu_custom_call.1} parent=1 // pred_check_branch
      %12 = sbr.rel (0) target = $region5
    $region4: #{tpu_custom_call.1} parent=1 // pred_region
      _
    $region5: #{tpu_custom_call.1} parent=1 // pred_fallthru
      _
    // Predicated region
    $region6: #{tpu_custom_call.1} parent=1 // pred_check
      _
    $region7: #{tpu_custom_call.1} parent=1 // pred_check_branch
      %14 = sbr.rel (0) target = $region9
    $region8: #{tpu_custom_call.1} parent=1 // pred_region
      _
    $region9: #{tpu_custom_call.1} parent=1 // pred_fallthru
      _
    %v15 = vld [vmem:[%s0] sm:$0xff]
    %v16 = vld [vmem:[%s0 + $0x8] sm:$0xff]
    %v17 = vcvt.s32.f32 %v15
    %v18 = vcvt.s32.f32 %v16
    %v19 = vld [vmem:[%s1] sm:$0x1]
    %21 = vset.pattern.permute.xlu0 0
    %22 = vperm.xlu0 %21, %v17
    %v23 = vpop.permute.xlu0 %22
    %26 = vset.pattern.permute.xlu0 0
    %27 = vperm.xlu0 %26, %v18
    %v28 = vpop.permute.xlu0 %27
    %v31 = vperm.slane %v19, 0
    %v33 = vmul.f32 %v23, %v31
    %v34 = vmul.f32 %v28, %v31
    %v35 = vand.u32 2147483647, %v33
    %vm36 = vcmp.le.f32.partialorder %v35, 0.7853982
    %vm37 = vcmp.lt.s32.totalorder %v33, 0
    %v38 = vand.u32 %v33, 2139095040
    %v39 = vshrl.u32 %v38, 23
    %v40 = vsub.s32 %v39, 127
    %v41 = vand.u32 2147483647, %v33
    %v42 = vand.u32 %v41, 8388607
    %v43 = vor.u32 %v42, 8388608
    %v44 = vsub.s32 0, %v43
    %v45 = vadd.s32 %v40, 1
    %vm46 = vcmp.gt.s32.totalorder %v45, 0
    %v47 = vsel %vm46, %v45, 0
    %v48 = vshrl.u32 %v47, 5
    %v49 = vand.u32 %v47, 31
    %v50 = vsub.s32 32, %v49
    %v51 = vshrl.u32 683565275, %v50
    %v52 = vshll.u32 683565275, %v49
    %v53 = vshrl.u32 2475754826, %v50
    %v54 = vor.u32 %v52, %v53
    %v55 = vshll.u32 2475754826, %v49
    %v56 = vshrl.u32 2131351028, %v50
    %v57 = vor.u32 %v55, %v56
    %v58 = vshll.u32 2131351028, %v49
    %v59 = vshrl.u32 2102212464, %v50
    %v60 = vor.u32 %v58, %v59
    %v61 = vshll.u32 2102212464, %v49
    %v62 = vshrl.u32 920167782, %v50
    %v63 = vor.u32 %v61, %v62
    %v64 = vshll.u32 920167782, %v49
    %v65 = vshrl.u32 1326507024, %v50
    %v66 = vor.u32 %v64, %v65
    %vm67 = vcmp.lt.s32.totalorder %v48, 1
    %vm68 = vcmp.lt.s32.totalorder %v48, 2
    %vm69 = vcmp.lt.s32.totalorder %v48, 3
    %vm70 = vcmp.lt.s32.totalorder %v48, 4
    %v71 = vsel %vm67, %v51, %v54
    %v72 = vsel %vm70, %v60, 2102212464
    %v73 = vsel %vm69, %v57, %v72
    %v74 = vsel %vm68, %v71, %v73
    %v75 = vsel %vm67, %v54, %v57
    %v76 = vsel %vm70, %v63, 920167782
    %v77 = vsel %vm69, %v60, %v76
    %v78 = vsel %vm68, %v75, %v77
    %v79 = vsel %vm67, %v57, %v60
    %v80 = vsel %vm70, %v66, 1326507024
    %v81 = vsel %vm69, %v63, %v80
    %v82 = vsel %vm68, %v79, %v81
    %v83 = vshll.u32 %v43, 8
    %v84 = vand.u32 %v83, 65535
    %v85 = vshrl.u32 %v83, 16
    %v86 = vand.u32 %v82, 65535
    %v87 = vshrl.u32 %v82, 16
    %v88 = vmul.u32 %v84, %v86
    %v89 = vmul.u32 %v84, %v87
    %v90 = vmul.u32 %v85, %v86
    %v91 = vmul.u32 %v85, %v87
    %v92 = vshll.u32 %v89, 16
    %v93 = vshrl.u32 %v89, 16
    %v94 = vshll.u32 %v90, 16
    %v95 = vshrl.u32 %v90, 16
    %vm96 = vc.u32 %v88, %v92
    %v97 = vsel %vm96, 1, 0
    %v98 = vadd.s32 %v88, %v92
    %v99 = vadd.s32 %v91, %v97
    %vm100 = vc.u32 %v98, %v94
    %v101 = vsel %vm100, 1, 0
    %v102 = vadd.s32 %v98, %v94
    %v103 = vadd.s32 %v99, %v101
    %v104 = vadd.s32 %v103, %v93
    %v105 = vadd.s32 %v104, %v95
    %v106 = vand.u32 %v83, 65535
    %v107 = vshrl.u32 %v83, 16
    %v108 = vand.u32 %v78, 65535
    %v109 = vshrl.u32 %v78, 16
    %v110 = vmul.u32 %v106, %v108
    %v111 = vmul.u32 %v106, %v109
    %v112 = vmul.u32 %v107, %v108
    %v113 = vmul.u32 %v107, %v109
    %v114 = vshll.u32 %v111, 16
    %v115 = vshrl.u32 %v111, 16
    %v116 = vshll.u32 %v112, 16
    %v117 = vshrl.u32 %v112, 16
    %vm118 = vc.u32 %v110, %v114
    %v119 = vsel %vm118, 1, 0
    %v120 = vadd.s32 %v110, %v114
    %v121 = vadd.s32 %v113, %v119
    %vm122 = vc.u32 %v120, %v116
    %v123 = vsel %vm122, 1, 0
    %v124 = vadd.s32 %v120, %v116
    %v125 = vadd.s32 %v121, %v123
    %v126 = vadd.s32 %v125, %v115
    %v127 = vadd.s32 %v126, %v117
    %v128 = vmul.u32 %v83, %v74
    %v129 = vadd.s32 %v105, %v124
    %vm130 = vc.u32 %v105, %v124
    %v131 = vadd.s32 %v127, 1
    %v132 = vsel %vm130, %v131, %v127
    %v133 = vadd.s32 %v128, %v132
    %v134 = vadd.s32 %v133, 536870912
    %v135 = vshrl.u32 %v134, 30
    %v136 = vshll.u32 %v135, 30
    %v137 = vsub.s32 %v133, %v136
    %vm138 = vcmp.lt.s32.totalorder %v137, 0
    %v139 = vsub.s32 0, %v137
    %v140 = vsel %vm138, %v139, %v137
    %v141 = vclz %v140
    %v142 = vsub.s32 %v141, 2
    %vm143 = vcmp.gt.s32.totalorder 0, %v142
    %v144 = vsel %vm143, 0, %v142
    %v145 = vsub.s32 32, %v144
    %v146 = vshll.u32 %v137, %v144
    %v147 = vshrl.u32 %v129, %v145
    %v148 = vor.u32 %v146, %v147
    %v149 = vsub.s32 4294967266, %v144
    %v150 = vadd.s32 %v149, 127
    %v151 = vshll.u32 %v150, 23
    %v152 = vor.u32 4788187, %v151
    %v153 = vand.u32 2147483647, %v152
    %v155 = vcvt.s32.f32 %v148
    %v156 = vmul.f32 %v155, %v153
    %v157 = vxor.u32 %v156, 2147483648
    %v158 = vsel %vm37, %v157, %v156
    %v159 = vsub.s32 4, %v135
    %v160 = vsel %vm37, %v159, %v135
    %v161 = vsel %vm36, %v33, %v158
    %v162 = vsel %vm36, 0, %v160
    %v163 = vmul.f32 %v161, %v161
    %v164 = vmul.f32 %v163, -0.001358992
    %v165 = vadd.f32 %v164, 0.041655596
    %v166 = vmul.f32 %v163, %v165
    %v167 = vadd.f32 %v166, -0.4999988
    %v168 = vmul.f32 %v163, %v167
    %v169 = vadd.f32 1.0, %v168
    %v170 = vmul.f32 %v161, %v161
    %v171 = vmul.f32 %v170, -0.00019511016
    %v172 = vadd.f32 %v171, 0.008332121
    %v173 = vmul.f32 %v170, %v172
    %v174 = vadd.f32 %v173, -0.16666654
    %v175 = vmul.f32 %v170, %v174
    %v176 = vadd.f32 %v175, 1.0
    %v177 = vmul.f32 %v176, %v161
    %vm178 = vweird.f32 %v33
    %v179 = vand.u32 %v162, 3
    %vm180 = vcmp.lt.s32.totalorder %v179, 2
    %vm181 = vcmp.eq.s32.totalorder %v179, 0
    %v182 = vxor.u32 %v177, 2147483648
    %v183 = vsel %vm181, %v169, %v182
    %vm184 = vcmp.eq.s32.totalorder %v179, 2
    %v185 = vxor.u32 %v169, 2147483648
    %v186 = vsel %vm184, %v185, %v177
    %v187 = vsel %vm180, %v183, %v186
    %v188 = vsel %vm178, nan, %v187
    %v189 = vand.u32 2147483647, %v34
    %vm190 = vcmp.le.f32.partialorder %v189, 0.7853982
    %vm191 = vcmp.lt.s32.totalorder %v34, 0
    %v192 = vand.u32 %v34, 2139095040
    %v193 = vshrl.u32 %v192, 23
    %v194 = vsub.s32 %v193, 127
    %v195 = vand.u32 2147483647, %v34
    %v196 = vand.u32 %v195, 8388607
    %v197 = vor.u32 %v196, 8388608
    %v198 = vsub.s32 0, %v197
    %v199 = vadd.s32 %v194, 1
    %vm200 = vcmp.gt.s32.totalorder %v199, 0
    %v201 = vsel %vm200, %v199, 0
    %v202 = vshrl.u32 %v201, 5
    %v203 = vand.u32 %v201, 31
    %v204 = vsub.s32 32, %v203
    %v205 = vshrl.u32 683565275, %v204
    %v206 = vshll.u32 683565275, %v203
    %v207 = vshrl.u32 2475754826, %v204
    %v208 = vor.u32 %v206, %v207
    %v209 = vshll.u32 2475754826, %v203
    %v210 = vshrl.u32 2131351028, %v204
    %v211 = vor.u32 %v209, %v210
    %v212 = vshll.u32 2131351028, %v203
    %v213 = vshrl.u32 2102212464, %v204
    %v214 = vor.u32 %v212, %v213
    %v215 = vshll.u32 2102212464, %v203
    %v216 = vshrl.u32 920167782, %v204
    %v217 = vor.u32 %v215, %v216
    %v218 = vshll.u32 920167782, %v203
    %v219 = vshrl.u32 1326507024, %v204
    %v220 = vor.u32 %v218, %v219
    %vm221 = vcmp.lt.s32.totalorder %v202, 1
    %vm222 = vcmp.lt.s32.totalorder %v202, 2
    %vm223 = vcmp.lt.s32.totalorder %v202, 3
    %vm224 = vcmp.lt.s32.totalorder %v202, 4
    %v225 = vsel %vm221, %v205, %v208
    %v226 = vsel %vm224, %v214, 2102212464
    %v227 = vsel %vm223, %v211, %v226
    %v228 = vsel %vm222, %v225, %v227
    %v229 = vsel %vm221, %v208, %v211
    %v230 = vsel %vm224, %v217, 920167782
    %v231 = vsel %vm223, %v214, %v230
    %v232 = vsel %vm222, %v229, %v231
    %v233 = vsel %vm221, %v211, %v214
    %v234 = vsel %vm224, %v220, 1326507024
    %v235 = vsel %vm223, %v217, %v234
    %v236 = vsel %vm222, %v233, %v235
    %v237 = vshll.u32 %v197, 8
    %v238 = vand.u32 %v237, 65535
    %v239 = vshrl.u32 %v237, 16
    %v240 = vand.u32 %v236, 65535
    %v241 = vshrl.u32 %v236, 16
    %v242 = vmul.u32 %v238, %v240
    %v243 = vmul.u32 %v238, %v241
    %v244 = vmul.u32 %v239, %v240
    %v245 = vmul.u32 %v239, %v241
    %v246 = vshll.u32 %v243, 16
    %v247 = vshrl.u32 %v243, 16
    %v248 = vshll.u32 %v244, 16
    %v249 = vshrl.u32 %v244, 16
    %vm250 = vc.u32 %v242, %v246
    %v251 = vsel %vm250, 1, 0
    %v252 = vadd.s32 %v242, %v246
    %v253 = vadd.s32 %v245, %v251
    %vm254 = vc.u32 %v252, %v248
    %v255 = vsel %vm254, 1, 0
    %v256 = vadd.s32 %v252, %v248
    %v257 = vadd.s32 %v253, %v255
    %v258 = vadd.s32 %v257, %v247
    %v259 = vadd.s32 %v258, %v249
    %v260 = vand.u32 %v237, 65535
    %v261 = vshrl.u32 %v237, 16
    %v262 = vand.u32 %v232, 65535
    %v263 = vshrl.u32 %v232, 16
    %v264 = vmul.u32 %v260, %v262
    %v265 = vmul.u32 %v260, %v263
    %v266 = vmul.u32 %v261, %v262
    %v267 = vmul.u32 %v261, %v263
    %v268 = vshll.u32 %v265, 16
    %v269 = vshrl.u32 %v265, 16
    %v270 = vshll.u32 %v266, 16
    %v271 = vshrl.u32 %v266, 16
    %vm272 = vc.u32 %v264, %v268
    %v273 = vsel %vm272, 1, 0
    %v274 = vadd.s32 %v264, %v268
    %v275 = vadd.s32 %v267, %v273
    %vm276 = vc.u32 %v274, %v270
    %v277 = vsel %vm276, 1, 0
    %v278 = vadd.s32 %v274, %v270
    %v279 = vadd.s32 %v275, %v277
    %v280 = vadd.s32 %v279, %v269
    %v281 = vadd.s32 %v280, %v271
    %v282 = vmul.u32 %v237, %v228
    %v283 = vadd.s32 %v259, %v278
    %vm284 = vc.u32 %v259, %v278
    %v285 = vadd.s32 %v281, 1
    %v286 = vsel %vm284, %v285, %v281
    %v287 = vadd.s32 %v282, %v286
    %v288 = vadd.s32 %v287, 536870912
    %v289 = vshrl.u32 %v288, 30
    %v290 = vshll.u32 %v289, 30
    %v291 = vsub.s32 %v287, %v290
    %vm292 = vcmp.lt.s32.totalorder %v291, 0
    %v293 = vsub.s32 0, %v291
    %v294 = vsel %vm292, %v293, %v291
    %v295 = vclz %v294
    %v296 = vsub.s32 %v295, 2
    %vm297 = vcmp.gt.s32.totalorder 0, %v296
    %v298 = vsel %vm297, 0, %v296
    %v299 = vsub.s32 32, %v298
    %v300 = vshll.u32 %v291, %v298
    %v301 = vshrl.u32 %v283, %v299
    %v302 = vor.u32 %v300, %v301
    %v303 = vsub.s32 4294967266, %v298
    %v304 = vadd.s32 %v303, 127
    %v305 = vshll.u32 %v304, 23
    %v306 = vor.u32 4788187, %v305
    %v307 = vand.u32 2147483647, %v306
    %v309 = vcvt.s32.f32 %v302
    %v310 = vmul.f32 %v309, %v307
    %v311 = vxor.u32 %v310, 2147483648
    %v312 = vsel %vm191, %v311, %v310
    %v313 = vsub.s32 4, %v289
    %v314 = vsel %vm191, %v313, %v289
    %v315 = vsel %vm190, %v34, %v312
    %v316 = vsel %vm190, 0, %v314
    %v317 = vmul.f32 %v315, %v315
    %v318 = vmul.f32 %v317, -0.001358992
    %v319 = vadd.f32 %v318, 0.041655596
    %v320 = vmul.f32 %v317, %v319
    %v321 = vadd.f32 %v320, -0.4999988
    %v322 = vmul.f32 %v317, %v321
    %v323 = vadd.f32 1.0, %v322
    %v324 = vmul.f32 %v315, %v315
    %v325 = vmul.f32 %v324, -0.00019511016
    %v326 = vadd.f32 %v325, 0.008332121
    %v327 = vmul.f32 %v324, %v326
    %v328 = vadd.f32 %v327, -0.16666654
    %v329 = vmul.f32 %v324, %v328
    %v330 = vadd.f32 %v329, 1.0
    %v331 = vmul.f32 %v330, %v315
    %vm332 = vweird.f32 %v34
    %v333 = vand.u32 %v316, 3
    %vm334 = vcmp.lt.s32.totalorder %v333, 2
    %vm335 = vcmp.eq.s32.totalorder %v333, 0
    %v336 = vxor.u32 %v331, 2147483648
    %v337 = vsel %vm335, %v323, %v336
    %vm338 = vcmp.eq.s32.totalorder %v333, 2
    %v339 = vxor.u32 %v323, 2147483648
    %v340 = vsel %vm338, %v339, %v331
    %v341 = vsel %vm334, %v337, %v340
    %v342 = vsel %vm332, nan, %v341
    %vm343 = vcmask 261120
    %344 = vst.msk [vmem:[#allocation2] sm:$0xff] %vm343, %v188
    %345 = vst.msk [vmem:[#allocation2 + $0x8] sm:$0xff] %vm343, %v342
    %v346 = vand.u32 2147483647, %v33
    %vm347 = vcmp.le.f32.partialorder %v346, 0.7853982
    %vm348 = vcmp.lt.s32.totalorder %v33, 0
    %v349 = vand.u32 %v33, 2139095040
    %v350 = vshrl.u32 %v349, 23
    %v351 = vsub.s32 %v350, 127
    %v352 = vand.u32 2147483647, %v33
    %v353 = vand.u32 %v352, 8388607
    %v354 = vor.u32 %v353, 8388608
    %v355 = vsub.s32 0, %v354
    %v356 = vadd.s32 %v351, 1
    %vm357 = vcmp.gt.s32.totalorder %v356, 0
    %v358 = vsel %vm357, %v356, 0
    %v359 = vshrl.u32 %v358, 5
    %v360 = vand.u32 %v358, 31
    %v361 = vsub.s32 32, %v360
    %v362 = vshrl.u32 683565275, %v361
    %v363 = vshll.u32 683565275, %v360
    %v364 = vshrl.u32 2475754826, %v361
    %v365 = vor.u32 %v363, %v364
    %v366 = vshll.u32 2475754826, %v360
    %v367 = vshrl.u32 2131351028, %v361
    %v368 = vor.u32 %v366, %v367
    %v369 = vshll.u32 2131351028, %v360
    %v370 = vshrl.u32 2102212464, %v361
    %v371 = vor.u32 %v369, %v370
    %v372 = vshll.u32 2102212464, %v360
    %v373 = vshrl.u32 920167782, %v361
    %v374 = vor.u32 %v372, %v373
    %v375 = vshll.u32 920167782, %v360
    %v376 = vshrl.u32 1326507024, %v361
    %v377 = vor.u32 %v375, %v376
    %vm378 = vcmp.lt.s32.totalorder %v359, 1
    %vm379 = vcmp.lt.s32.totalorder %v359, 2
    %vm380 = vcmp.lt.s32.totalorder %v359, 3
    %vm381 = vcmp.lt.s32.totalorder %v359, 4
    %v382 = vsel %vm378, %v362, %v365
    %v383 = vsel %vm381, %v371, 2102212464
    %v384 = vsel %vm380, %v368, %v383
    %v385 = vsel %vm379, %v382, %v384
    %v386 = vsel %vm378, %v365, %v368
    %v387 = vsel %vm381, %v374, 920167782
    %v388 = vsel %vm380, %v371, %v387
    %v389 = vsel %vm379, %v386, %v388
    %v390 = vsel %vm378, %v368, %v371
    %v391 = vsel %vm381, %v377, 1326507024
    %v392 = vsel %vm380, %v374, %v391
    %v393 = vsel %vm379, %v390, %v392
    %v394 = vshll.u32 %v354, 8
    %v395 = vand.u32 %v394, 65535
    %v396 = vshrl.u32 %v394, 16
    %v397 = vand.u32 %v393, 65535
    %v398 = vshrl.u32 %v393, 16
    %v399 = vmul.u32 %v395, %v397
    %v400 = vmul.u32 %v395, %v398
    %v401 = vmul.u32 %v396, %v397
    %v402 = vmul.u32 %v396, %v398
    %v403 = vshll.u32 %v400, 16
    %v404 = vshrl.u32 %v400, 16
    %v405 = vshll.u32 %v401, 16
    %v406 = vshrl.u32 %v401, 16
    %vm407 = vc.u32 %v399, %v403
    %v408 = vsel %vm407, 1, 0
    %v409 = vadd.s32 %v399, %v403
    %v410 = vadd.s32 %v402, %v408
    %vm411 = vc.u32 %v409, %v405
    %v412 = vsel %vm411, 1, 0
    %v413 = vadd.s32 %v409, %v405
    %v414 = vadd.s32 %v410, %v412
    %v415 = vadd.s32 %v414, %v404
    %v416 = vadd.s32 %v415, %v406
    %v417 = vand.u32 %v394, 65535
    %v418 = vshrl.u32 %v394, 16
    %v419 = vand.u32 %v389, 65535
    %v420 = vshrl.u32 %v389, 16
    %v421 = vmul.u32 %v417, %v419
    %v422 = vmul.u32 %v417, %v420
    %v423 = vmul.u32 %v418, %v419
    %v424 = vmul.u32 %v418, %v420
    %v425 = vshll.u32 %v422, 16
    %v426 = vshrl.u32 %v422, 16
    %v427 = vshll.u32 %v423, 16
    %v428 = vshrl.u32 %v423, 16
    %vm429 = vc.u32 %v421, %v425
    %v430 = vsel %vm429, 1, 0
    %v431 = vadd.s32 %v421, %v425
    %v432 = vadd.s32 %v424, %v430
    %vm433 = vc.u32 %v431, %v427
    %v434 = vsel %vm433, 1, 0
    %v435 = vadd.s32 %v431, %v427
    %v436 = vadd.s32 %v432, %v434
    %v437 = vadd.s32 %v436, %v426
    %v438 = vadd.s32 %v437, %v428
    %v439 = vmul.u32 %v394, %v385
    %v440 = vadd.s32 %v416, %v435
    %vm441 = vc.u32 %v416, %v435
    %v442 = vadd.s32 %v438, 1
    %v443 = vsel %vm441, %v442, %v438
    %v444 = vadd.s32 %v439, %v443
    %v445 = vadd.s32 %v444, 536870912
    %v446 = vshrl.u32 %v445, 30
    %v447 = vshll.u32 %v446, 30
    %v448 = vsub.s32 %v444, %v447
    %vm449 = vcmp.lt.s32.totalorder %v448, 0
    %v450 = vsub.s32 0, %v448
    %v451 = vsel %vm449, %v450, %v448
    %v452 = vclz %v451
    %v453 = vsub.s32 %v452, 2
    %vm454 = vcmp.gt.s32.totalorder 0, %v453
    %v455 = vsel %vm454, 0, %v453
    %v456 = vsub.s32 32, %v455
    %v457 = vshll.u32 %v448, %v455
    %v458 = vshrl.u32 %v440, %v456
    %v459 = vor.u32 %v457, %v458
    %v460 = vsub.s32 4294967266, %v455
    %v461 = vadd.s32 %v460, 127
    %v462 = vshll.u32 %v461, 23
    %v463 = vor.u32 4788187, %v462
    %v464 = vand.u32 2147483647, %v463
    %v466 = vcvt.s32.f32 %v459
    %v467 = vmul.f32 %v466, %v464
    %v468 = vxor.u32 %v467, 2147483648
    %v469 = vsel %vm348, %v468, %v467
    %v470 = vsub.s32 4, %v446
    %v471 = vsel %vm348, %v470, %v446
    %v472 = vsel %vm347, %v33, %v469
    %v473 = vsel %vm347, 0, %v471
    %v474 = vmul.f32 %v472, %v472
    %v475 = vmul.f32 %v474, -0.001358992
    %v476 = vadd.f32 %v475, 0.041655596
    %v477 = vmul.f32 %v474, %v476
    %v478 = vadd.f32 %v477, -0.4999988
    %v479 = vmul.f32 %v474, %v478
    %v480 = vadd.f32 1.0, %v479
    %v481 = vmul.f32 %v472, %v472
    %v482 = vmul.f32 %v481, -0.00019511016
    %v483 = vadd.f32 %v482, 0.008332121
    %v484 = vmul.f32 %v481, %v483
    %v485 = vadd.f32 %v484, -0.16666654
    %v486 = vmul.f32 %v481, %v485
    %v487 = vadd.f32 %v486, 1.0
    %v488 = vmul.f32 %v487, %v472
    %vm489 = vweird.f32 %v33
    %v490 = vadd.s32 %v473, 3
    %v491 = vand.u32 %v490, 3
    %vm492 = vcmp.lt.s32.totalorder %v491, 2
    %vm493 = vcmp.eq.s32.totalorder %v491, 0
    %v494 = vxor.u32 %v488, 2147483648
    %v495 = vsel %vm493, %v480, %v494
    %vm496 = vcmp.eq.s32.totalorder %v491, 2
    %v497 = vxor.u32 %v480, 2147483648
    %v498 = vsel %vm496, %v497, %v488
    %v499 = vsel %vm492, %v495, %v498
    %v500 = vsel %vm489, nan, %v499
    %v501 = vand.u32 2147483647, %v34
    %vm502 = vcmp.le.f32.partialorder %v501, 0.7853982
    %vm503 = vcmp.lt.s32.totalorder %v34, 0
    %v504 = vand.u32 %v34, 2139095040
    %v505 = vshrl.u32 %v504, 23
    %v506 = vsub.s32 %v505, 127
    %v507 = vand.u32 2147483647, %v34
    %v508 = vand.u32 %v507, 8388607
    %v509 = vor.u32 %v508, 8388608
    %v510 = vsub.s32 0, %v509
    %v511 = vadd.s32 %v506, 1
    %vm512 = vcmp.gt.s32.totalorder %v511, 0
    %v513 = vsel %vm512, %v511, 0
    %v514 = vshrl.u32 %v513, 5
    %v515 = vand.u32 %v513, 31
    %v516 = vsub.s32 32, %v515
    %v517 = vshrl.u32 683565275, %v516
    %v518 = vshll.u32 683565275, %v515
    %v519 = vshrl.u32 2475754826, %v516
    %v520 = vor.u32 %v518, %v519
    %v521 = vshll.u32 2475754826, %v515
    %v522 = vshrl.u32 2131351028, %v516
    %v523 = vor.u32 %v521, %v522
    %v524 = vshll.u32 2131351028, %v515
    %v525 = vshrl.u32 2102212464, %v516
    %v526 = vor.u32 %v524, %v525
    %v527 = vshll.u32 2102212464, %v515
    %v528 = vshrl.u32 920167782, %v516
    %v529 = vor.u32 %v527, %v528
    %v530 = vshll.u32 920167782, %v515
    %v531 = vshrl.u32 1326507024, %v516
    %v532 = vor.u32 %v530, %v531
    %vm533 = vcmp.lt.s32.totalorder %v514, 1
    %vm534 = vcmp.lt.s32.totalorder %v514, 2
    %vm535 = vcmp.lt.s32.totalorder %v514, 3
    %vm536 = vcmp.lt.s32.totalorder %v514, 4
    %v537 = vsel %vm533, %v517, %v520
    %v538 = vsel %vm536, %v526, 2102212464
    %v539 = vsel %vm535, %v523, %v538
    %v540 = vsel %vm534, %v537, %v539
    %v541 = vsel %vm533, %v520, %v523
    %v542 = vsel %vm536, %v529, 920167782
    %v543 = vsel %vm535, %v526, %v542
    %v544 = vsel %vm534, %v541, %v543
    %v545 = vsel %vm533, %v523, %v526
    %v546 = vsel %vm536, %v532, 1326507024
    %v547 = vsel %vm535, %v529, %v546
    %v548 = vsel %vm534, %v545, %v547
    %v549 = vshll.u32 %v509, 8
    %v550 = vand.u32 %v549, 65535
    %v551 = vshrl.u32 %v549, 16
    %v552 = vand.u32 %v548, 65535
    %v553 = vshrl.u32 %v548, 16
    %v554 = vmul.u32 %v550, %v552
    %v555 = vmul.u32 %v550, %v553
    %v556 = vmul.u32 %v551, %v552
    %v557 = vmul.u32 %v551, %v553
    %v558 = vshll.u32 %v555, 16
    %v559 = vshrl.u32 %v555, 16
    %v560 = vshll.u32 %v556, 16
    %v561 = vshrl.u32 %v556, 16
    %vm562 = vc.u32 %v554, %v558
    %v563 = vsel %vm562, 1, 0
    %v564 = vadd.s32 %v554, %v558
    %v565 = vadd.s32 %v557, %v563
    %vm566 = vc.u32 %v564, %v560
    %v567 = vsel %vm566, 1, 0
    %v568 = vadd.s32 %v564, %v560
    %v569 = vadd.s32 %v565, %v567
    %v570 = vadd.s32 %v569, %v559
    %v571 = vadd.s32 %v570, %v561
    %v572 = vand.u32 %v549, 65535
    %v573 = vshrl.u32 %v549, 16
    %v574 = vand.u32 %v544, 65535
    %v575 = vshrl.u32 %v544, 16
    %v576 = vmul.u32 %v572, %v574
    %v577 = vmul.u32 %v572, %v575
    %v578 = vmul.u32 %v573, %v574
    %v579 = vmul.u32 %v573, %v575
    %v580 = vshll.u32 %v577, 16
    %v581 = vshrl.u32 %v577, 16
    %v582 = vshll.u32 %v578, 16
    %v583 = vshrl.u32 %v578, 16
    %vm584 = vc.u32 %v576, %v580
    %v585 = vsel %vm584, 1, 0
    %v586 = vadd.s32 %v576, %v580
    %v587 = vadd.s32 %v579, %v585
    %vm588 = vc.u32 %v586, %v582
    %v589 = vsel %vm588, 1, 0
    %v590 = vadd.s32 %v586, %v582
    %v591 = vadd.s32 %v587, %v589
    %v592 = vadd.s32 %v591, %v581
    %v593 = vadd.s32 %v592, %v583
    %v594 = vmul.u32 %v549, %v540
    %v595 = vadd.s32 %v571, %v590
    %vm596 = vc.u32 %v571, %v590
    %v597 = vadd.s32 %v593, 1
    %v598 = vsel %vm596, %v597, %v593
    %v599 = vadd.s32 %v594, %v598
    %v600 = vadd.s32 %v599, 536870912
    %v601 = vshrl.u32 %v600, 30
    %v602 = vshll.u32 %v601, 30
    %v603 = vsub.s32 %v599, %v602
    %vm604 = vcmp.lt.s32.totalorder %v603, 0
    %v605 = vsub.s32 0, %v603
    %v606 = vsel %vm604, %v605, %v603
    %v607 = vclz %v606
    %v608 = vsub.s32 %v607, 2
    %vm609 = vcmp.gt.s32.totalorder 0, %v608
    %v610 = vsel %vm609, 0, %v608
    %v611 = vsub.s32 32, %v610
    %v612 = vshll.u32 %v603, %v610
    %v613 = vshrl.u32 %v595, %v611
    %v614 = vor.u32 %v612, %v613
    %v615 = vsub.s32 4294967266, %v610
    %v616 = vadd.s32 %v615, 127
    %v617 = vshll.u32 %v616, 23
    %v618 = vor.u32 4788187, %v617
    %v619 = vand.u32 2147483647, %v618
    %v621 = vcvt.s32.f32 %v614
    %v622 = vmul.f32 %v621, %v619
    %v623 = vxor.u32 %v622, 2147483648
    %v624 = vsel %vm503, %v623, %v622
    %v625 = vsub.s32 4, %v601
    %v626 = vsel %vm503, %v625, %v601
    %v627 = vsel %vm502, %v34, %v624
    %v628 = vsel %vm502, 0, %v626
    %v629 = vmul.f32 %v627, %v627
    %v630 = vmul.f32 %v629, -0.001358992
    %v631 = vadd.f32 %v630, 0.041655596
    %v632 = vmul.f32 %v629, %v631
    %v633 = vadd.f32 %v632, -0.4999988
    %v634 = vmul.f32 %v629, %v633
    %v635 = vadd.f32 1.0, %v634
    %v636 = vmul.f32 %v627, %v627
    %v637 = vmul.f32 %v636, -0.00019511016
    %v638 = vadd.f32 %v637, 0.008332121
    %v639 = vmul.f32 %v636, %v638
    %v640 = vadd.f32 %v639, -0.16666654
    %v641 = vmul.f32 %v636, %v640
    %v642 = vadd.f32 %v641, 1.0
    %v643 = vmul.f32 %v642, %v627
    %vm644 = vweird.f32 %v34
    %v645 = vadd.s32 %v628, 3
    %v646 = vand.u32 %v645, 3
    %vm647 = vcmp.lt.s32.totalorder %v646, 2
    %vm648 = vcmp.eq.s32.totalorder %v646, 0
    %v649 = vxor.u32 %v643, 2147483648
    %v650 = vsel %vm648, %v635, %v649
    %vm651 = vcmp.eq.s32.totalorder %v646, 2
    %v652 = vxor.u32 %v635, 2147483648
    %v653 = vsel %vm651, %v652, %v643
    %v654 = vsel %vm647, %v650, %v653
    %v655 = vsel %vm644, nan, %v654
    %656 = vst.msk [vmem:[#allocation4] sm:$0xff] %vm343, %v500
    %657 = vst.msk [vmem:[#allocation4 + $0x8] sm:$0xff] %vm343, %v655
    // Predicated region
    $region10: #{tpu_custom_call.1} parent=1 // pred_check
      _
    $region11: #{tpu_custom_call.1} parent=1 // pred_check_branch
      %659 = sbr.rel (0) target = $region13
    $region12: #{tpu_custom_call.1} parent=1 // pred_region
      %661 = vsyncadd [#allocation3], 0
      %s662 = sshll.u32 [#allocation2], 4
      %s663 = int_to_ptr.vmem [resolvable:$true] %s662
      %s664 = sshll.u32 %s2, 4
      %s665 = int_to_ptr.hbm [resolvable:$true] %s664
      %670 = dma.vmem_to_hbm [thread:$0]  %s663, 256, %s665, [#allocation3], 128, 128, 8
    $region13: #{tpu_custom_call.1} parent=1 // pred_fallthru
      _
    // Predicated region
    $region14: #{tpu_custom_call.1} parent=1 // pred_check
      _
    $region15: #{tpu_custom_call.1} parent=1 // pred_check_branch
      %672 = sbr.rel (0) target = $region17
    $region16: #{tpu_custom_call.1} parent=1 // pred_region
      %674 = vsyncadd [#allocation5], 0
      %s675 = sshll.u32 [#allocation4], 4
      %s676 = int_to_ptr.vmem [resolvable:$true] %s675
      %s677 = sshll.u32 %s3, 4
      %s678 = int_to_ptr.hbm [resolvable:$true] %s677
      %683 = dma.vmem_to_hbm [thread:$0]  %s676, 256, %s678, [#allocation5], 128, 128, 8
    $region17: #{tpu_custom_call.1} parent=1 // pred_fallthru
      _
    // Predicated region
    $region18: #{tpu_custom_call.1} parent=1 // pred_check
      _
    $region19: #{tpu_custom_call.1} parent=1 // pred_check_branch
      %685 = sbr.rel (0) target = $region21
    $region20: #{tpu_custom_call.1} parent=1 // pred_region
      %687 = dma.done [#allocation3], 256
    $region21: #{tpu_custom_call.1} parent=1 // pred_fallthru
      _
    // Predicated region
    $region22: #{tpu_custom_call.1} parent=1 // pred_check
      _
    $region23: #{tpu_custom_call.1} parent=1 // pred_check_branch
      %689 = sbr.rel (0) target = $region25
    $region24: #{tpu_custom_call.1} parent=1 // pred_region
      %691 = dma.done [#allocation5], 256
    $region25: #{tpu_custom_call.1} parent=1 // pred_fallthru
      _
    %692 = vsyncpa [#allocation3], 1
    %693 = vsyncpa [#allocation5], 1

</llo_original>
